<compile_context>
chip_gen: v5e
topology: v5e:2x2
jax: 0.10.0
libtpu: 0.0.40
codegen_flags: <defaults>
</compile_context>

<pallas_src>
import functools

import jax
import jax.numpy as jnp
from jax.experimental import pallas as pl
from jax.experimental.pallas import tpu as pltpu


def _mean_register_kernel(scalars_ref, x_ref, rm_ref, out_ref, acc_ref,
                          *, hw, hw_tile, need_mask):
    """Streaming per-channel sum over (n_tile, C, hw_tile) tiles; EMA at the end.

    scalars_ref: (2,) f32 SMEM   -> [alpha, 1/(N*H*W)]
    x_ref:       (n_tile, C, hw_tile) current tile of the (N, C, H*W) input (native dtype)
    rm_ref:      (C, 1) f32      previous running mean
    out_ref:     (C, 1) f32      new running mean
    acc_ref:     (C, hw_tile) f32 scratch accumulator (resident across the grid)
    """
    i = pl.program_id(0)
    j = pl.program_id(1)
    last_i = pl.num_programs(0) - 1
    last_j = pl.num_programs(1) - 1

    @pl.when((i == 0) & (j == 0))
    def _():
        acc_ref[...] = jnp.zeros_like(acc_ref)

    def partial_sum():
        # (n_tile, C, hw_tile) -> (C, hw_tile) f32.  The leading axis maps to
        # distinct vregs, so this reduction is plain VPU adds (no XLU).
        return jnp.sum(x_ref[...].astype(jnp.float32), axis=0)

    if need_mask:
        # Only the last HW tile has invalid (padded) lanes; keep full tiles on
        # the cheap unmasked path.
        @pl.when(j != last_j)
        def _():
            acc_ref[...] += partial_sum()

        @pl.when(j == last_j)
        def _():
            s = partial_sum()
            lane = jax.lax.broadcasted_iota(jnp.int32, s.shape, 1)
            acc_ref[...] += jnp.where(j * hw_tile + lane < hw, s, 0.0)
    else:
        acc_ref[...] += partial_sum()

    @pl.when((i == last_i) & (j == last_j))
    def _():
        alpha = scalars_ref[0]
        inv_total = scalars_ref[1]
        # Single cross-lane reduce (XLU) in the epilogue only.
        new_mean = jnp.sum(acc_ref[...], axis=-1, keepdims=True) * inv_total  # (C, 1)
        out_ref[...] = (1.0 - alpha) * rm_ref[...] + alpha * new_mean


def _choose_tiles(N, C, HW, itemsize, budget_bytes=12 * 1024 * 1024):
    """Pick (n_tile, hw_tile) under a VMEM budget.

    Accounts for sublane padding (C -> ceil(C/8)*8), double-buffered input
    blocks and the resident f32 accumulator.
    """
    c_pad = ((C + 7) // 8) * 8
    # Lane tile, assuming n_tile = 1.
    bytes_per_lane = c_pad * (2 * itemsize + 4)
    max_lanes = max(128, budget_bytes // bytes_per_lane)
    if HW <= max_lanes:
        hw_tile = int(HW)                       # full H*W as one lane block (always legal)
    else:
        hw_tile = int(min(2048, (max_lanes // 128) * 128))

    hw_pad = max(128, ((hw_tile + 127) // 128) * 128)
    acc_bytes = c_pad * hw_pad * 4
    n_tile = 1
    for cand in range(min(N, 64), 0, -1):       # largest divisor of N that fits
        if N % cand != 0:
            continue
        if cand * c_pad * hw_pad * 2 * itemsize + acc_bytes <= budget_bytes:
            n_tile = cand
            break
    return n_tile, hw_tile


def _mean_register_call(x_3d, rm, scalars, hw_tile=None, n_tile=None):
    N, C, HW = x_3d.shape
    auto_n, auto_hw = _choose_tiles(N, C, HW, x_3d.dtype.itemsize)
    if hw_tile is None:
        hw_tile = auto_hw
    if n_tile is None:
        n_tile = auto_n if N % auto_n == 0 else 1
    num_hw_tiles = pl.cdiv(HW, hw_tile)
    need_mask = (HW % hw_tile) != 0

    kernel = functools.partial(
        _mean_register_kernel, hw=HW, hw_tile=hw_tile, need_mask=need_mask)

    return pl.pallas_call(
        kernel,
        out_shape=jax.ShapeDtypeStruct((C, 1), jnp.float32),
        grid_spec=pltpu.PrefetchScalarGridSpec(
            num_scalar_prefetch=0,
            grid=(N // n_tile, num_hw_tiles),
            in_specs=[
                # [alpha, inv_total] live in SMEM: no recompile when alpha changes.
                pl.BlockSpec(memory_space=pltpu.MemorySpace.SMEM),
                # Input streamed directly in NCHW order: (n_tile, C, hw_tile) tiles.
                pl.BlockSpec((n_tile, C, hw_tile), lambda i, j: (i, 0, j)),
                # Previous running mean, resident.
                pl.BlockSpec((C, 1), lambda i, j: (0, 0)),
            ],
            out_specs=pl.BlockSpec((C, 1), lambda i, j: (0, 0)),
            scratch_shapes=[pltpu.VMEM((C, hw_tile), jnp.float32)],
        ),
        compiler_params=pltpu.CompilerParams(
            # Output is resident across both grid axes -> both are reduction axes.
            dimension_semantics=("arbitrary", "arbitrary"),
            vmem_limit_bytes=32 * 1024 * 1024,
        ),
    )(scalars, x_3d, rm)


class MeanRegister:
    """Stateful wrapper mirroring the PyTorch module."""

    def __init__(self, momentum=0.1, hw_tile=None, n_tile=None):
        self.momentum = momentum
        self.hw_tile = hw_tile          # optional overrides (mainly for testing)
        self.n_tile = n_tile
        self.running_mean = None        # shape (C,) once set
        # TODO(synk): running_mean is host-side Python state (as in the nn.Module);
        # it is not safe to share one MeanRegister instance across devices/traces.

    def forward(self, x_nchw):
        # Input is detached in the reference module: values only, no grad.
        N, C, H, W = x_nchw.shape
        HW = H * W
        # Contiguous reshape only -- no transpose, no upcast copy in HBM.
        x_3d = x_nchw.reshape(N, C, HW)

        if self.running_mean is None:
            rm = jnp.zeros((C, 1), jnp.float32)
            alpha = 1.0                 # overwrite on first call
        else:
            rm = self.running_mean.reshape(C, 1).astype(jnp.float32)
            alpha = float(self.momentum)

        scalars = jnp.array([alpha, 1.0 / float(N * HW)], jnp.float32)
        new_rm = _mean_register_call(x_3d, rm, scalars,
                                     hw_tile=self.hw_tile, n_tile=self.n_tile)
        self.running_mean = new_rm.reshape(C)
        # The reference forward returns None; the updated state is running_mean.
        return self.running_mean


if __name__ == "__main__":
    key = jax.random.PRNGKey(0)
    k1, k2, k3, k4 = jax.random.split(key, 4)

    N, C, H, W = 2, 4, 16, 16
    x1 = jax.random.normal(k1, (N, C, H, W), jnp.float32)
    x2 = jax.random.normal(k2, (N, C, H, W), jnp.float32)

    reg = MeanRegister(momentum=0.1)

    # First call: running_mean <- mean(x1, axis=(0, -1, -2)).  Small shape ->
    # the whole batch fits one (N, C, H*W) block -> single grid step.
    rm1 = reg.forward(x1)
    jax.block_until_ready(rm1)
    ref1 = jnp.mean(x1, axis=(0, 2, 3))

    # Second call: EMA update.
    rm2 = reg.forward(x2)
    jax.block_until_ready(rm2)
    ref2 = (1 - 0.1) * ref1 + 0.1 * jnp.mean(x2, axis=(0, 2, 3))

    assert rm1.shape == (C,) and rm2.shape == (C,)
    assert jnp.allclose(rm1, ref1, atol=1e-5, rtol=1e-5), (rm1, ref1)
    assert jnp.allclose(rm2, ref2, atol=1e-5, rtol=1e-5), (rm2, ref2)

    # Multi-tile + masked-tail path: H*W = 272 with a forced 128-lane tile ->
    # 3 HW tiles, last tile only 16 lanes valid.
    H3, W3 = 17, 16
    x3 = jax.random.normal(k3, (1, C, H3, W3), jnp.float32)
    reg2 = MeanRegister(momentum=0.1, hw_tile=128)
    rm3 = reg2.forward(x3)
    jax.block_until_ready(rm3)
    ref3 = jnp.mean(x3, axis=(0, 2, 3))
    assert jnp.allclose(rm3, ref3, atol=1e-5, rtol=1e-5), (rm3, ref3)

    # Multi-step accumulation across both grid axes (n_tile=1, hw_tile=128):
    # grid = (3, 2), exercises the resident accumulator over N and HW tiles.
    x4 = jax.random.normal(k4, (3, C, 16, 16), jnp.float32)
    reg3 = MeanRegister(momentum=0.1, hw_tile=128, n_tile=1)
    rm4 = reg3.forward(x4)
    jax.block_until_ready(rm4)
    ref4 = jnp.mean(x4, axis=(0, 2, 3))
    assert jnp.allclose(rm4, ref4, atol=1e-5, rtol=1e-5), (rm4, ref4)

    print("KERNEL_OK")
</pallas_src>

<mosaic_0001>
module attributes {stable_mosaic.version = 11 : i64} {
  func.func @_mean_register_kernel(%arg0: i32, %arg1: i32, %arg2: memref<2xf32, #tpu.memory_space<smem>>, %arg3: memref<2x4x256xf32, #tpu.memory_space<vmem>>, %arg4: memref<4x1xf32, #tpu.memory_space<vmem>>, %arg5: memref<4x1xf32, #tpu.memory_space<vmem>>, %arg6: memref<4x256xf32, #tpu.memory_space<vmem>>) attributes {dimension_semantics = [#tpu.dimension_semantics<arbitrary>, #tpu.dimension_semantics<arbitrary>], iteration_bounds = array<i64: 1, 1>, scalar_prefetch = 0 : i64, scratch_operands = 1 : i64, tpu.core_type = #tpu.core_type<tc>, window_params = [{transform_indices = @transform_0, window_bounds = array<i64: 2>}, {transform_indices = @transform_1, window_bounds = array<i64: 2, 4, 256>}, {pipeline_mode = #tpu.pipeline_mode<synchronous>, transform_indices = @transform_2, window_bounds = array<i64: 4, 1>}, {pipeline_mode = #tpu.pipeline_mode<synchronous>, transform_indices = @transform_3, window_bounds = array<i64: 4, 1>}]} {
    %c0_i32 = arith.constant 0 : i32
    %0 = arith.cmpi eq, %arg0, %c0_i32 : i32
    %c0_i32_0 = arith.constant 0 : i32
    %1 = arith.cmpi eq, %arg1, %c0_i32_0 : i32
    %2 = arith.andi %0, %1 : i1
    %3 = arith.extui %2 : i1 to i32
    %c0_i32_1 = arith.constant 0 : i32
    %4 = arith.cmpi ne, %3, %c0_i32_1 : i32
    scf.if %4 {
      %cst_11 = arith.constant 0.000000e+00 : f32
      %15 = vector.broadcast %cst_11 : f32 to vector<4x256xf32>
      %c0_12 = arith.constant 0 : index
      %c0_13 = arith.constant 0 : index
      %16 = vector.load %arg6[%c0_12, %c0_13] : memref<4x256xf32, #tpu.memory_space<vmem>>, vector<4x256xf32>
      tpu.vector_store %arg6[%c0_12, %c0_13], %15 {strides = array<i32>} : memref<4x256xf32, #tpu.memory_space<vmem>>, vector<4x256xf32>,
    } else {
    }
    %c0 = arith.constant 0 : index
    %c0_2 = arith.constant 0 : index
    %5 = vector.load %arg6[%c0, %c0_2] : memref<4x256xf32, #tpu.memory_space<vmem>>, vector<4x256xf32>
    %c0_3 = arith.constant 0 : index
    %c0_4 = arith.constant 0 : index
    %c0_5 = arith.constant 0 : index
    %6 = vector.load %arg3[%c0_3, %c0_4, %c0_5] : memref<2x4x256xf32, #tpu.memory_space<vmem>>, vector<2x4x256xf32>
    %cst = arith.constant dense<0.000000e+00> : vector<4x256xf32>
    %7 = vector.multi_reduction <add>, %6, %cst [0] : vector<2x4x256xf32> to vector<4x256xf32>
    %8 = arith.addf %5, %7 : vector<4x256xf32>
    %c0_6 = arith.constant 0 : index
    %c0_7 = arith.constant 0 : index
    %9 = vector.load %arg6[%c0_6, %c0_7] : memref<4x256xf32, #tpu.memory_space<vmem>>, vector<4x256xf32>
    tpu.vector_store %arg6[%c0_6, %c0_7], %8 {strides = array<i32>} : memref<4x256xf32, #tpu.memory_space<vmem>>, vector<4x256xf32>,
    %c0_i32_8 = arith.constant 0 : i32
    %10 = arith.cmpi eq, %arg0, %c0_i32_8 : i32
    %c0_i32_9 = arith.constant 0 : i32
    %11 = arith.cmpi eq, %arg1, %c0_i32_9 : i32
    %12 = arith.andi %10, %11 : i1
    %13 = arith.extui %12 : i1 to i32
    %c0_i32_10 = arith.constant 0 : i32
    %14 = arith.cmpi ne, %13, %c0_i32_10 : i32
    scf.if %14 {
      %c0_11 = arith.constant 0 : index
      %15 = memref.load %arg2[%c0_11] : memref<2xf32, #tpu.memory_space<smem>>
      %c1 = arith.constant 1 : index
      %16 = memref.load %arg2[%c1] : memref<2xf32, #tpu.memory_space<smem>>
      %c0_12 = arith.constant 0 : index
      %c0_13 = arith.constant 0 : index
      %17 = vector.load %arg6[%c0_12, %c0_13] : memref<4x256xf32, #tpu.memory_space<vmem>>, vector<4x256xf32>
      %cst_14 = arith.constant dense<0.000000e+00> : vector<4xf32>
      %18 = vector.multi_reduction <add>, %17, %cst_14 [1] : vector<4x256xf32> to vector<4xf32>
      %19 = vector.shape_cast %18 : vector<4xf32> to vector<4x1xf32>
      %20 = vector.broadcast %16 : f32 to vector<4x1xf32>
      %21 = arith.mulf %19, %20 : vector<4x1xf32>
      %cst_15 = arith.constant 1.000000e+00 : f32
      %22 = arith.subf %cst_15, %15 : f32
      %c0_16 = arith.constant 0 : index
      %c0_17 = arith.constant 0 : index
      %23 = vector.load %arg4[%c0_16, %c0_17] : memref<4x1xf32, #tpu.memory_space<vmem>>, vector<4x1xf32>
      %24 = vector.broadcast %22 : f32 to vector<4x1xf32>
      %25 = arith.mulf %24, %23 : vector<4x1xf32>
      %26 = vector.broadcast %15 : f32 to vector<4x1xf32>
      %27 = arith.mulf %26, %21 : vector<4x1xf32>
      %28 = arith.addf %25, %27 : vector<4x1xf32>
      %c0_18 = arith.constant 0 : index
      %c0_19 = arith.constant 0 : index
      %29 = vector.load %arg5[%c0_18, %c0_19] : memref<4x1xf32, #tpu.memory_space<vmem>>, vector<4x1xf32>
      tpu.vector_store %arg5[%c0_18, %c0_19], %28 {strides = array<i32>} : memref<4x1xf32, #tpu.memory_space<vmem>>, vector<4x1xf32>,
    } else {
    }
    return
  }
  func.func @transform_0(%arg0: i32, %arg1: i32) -> i32 {
    %c0_i32 = arith.constant 0 : i32
    %c0_i32_0 = arith.constant 0 : i32
    return %c0_i32 : i32
  }
  func.func @transform_1(%arg0: i32, %arg1: i32) -> (i32, i32, i32) {
    %c0_i32 = arith.constant 0 : i32
    %c0_i32_0 = arith.constant 0 : i32
    return %arg0, %c0_i32, %arg1 : i32, i32, i32
  }
  func.func @transform_2(%arg0: i32, %arg1: i32) -> (i32, i32) {
    %c0_i32 = arith.constant 0 : i32
    %c0_i32_0 = arith.constant 0 : i32
    %c0_i32_1 = arith.constant 0 : i32
    return %c0_i32, %c0_i32_0 : i32, i32
  }
  func.func @transform_3(%arg0: i32, %arg1: i32) -> (i32, i32) {
    %c0_i32 = arith.constant 0 : i32
    %c0_i32_0 = arith.constant 0 : i32
    %c0_i32_1 = arith.constant 0 : i32
    return %c0_i32, %c0_i32_0 : i32, i32
  }
}

</mosaic_0001>

<llo_original>
// kernel: tpu_custom_call.1
$region0: #{tpu_custom_call.1}
  #allocation0 [shape = 'u32[]', space=smem, size = 0x4, offset = 0x4, fixed_abs, tag = 'smem constant byte address 0x4 - core index']
  #allocation1 [shape = 'u32[72,128]{1,0:T(1,128)}', space=vmem, size = 0x9000, scoped, tag = 'internal scratch']
  #allocation2 [shape = 'f32[4,256]{1,0:T(4,128)}', space=vmem, size = 0x1000, scoped, tag = 'scratch operand']
  %s0 = inlined_call_operand.vmem [shape: f32[2], index: 0, kind: input, shape index: {}]
  %s1 = inlined_call_operand.hbm [shape: f32[2,4,256], index: 1, kind: input, shape index: {}]
  %s2 = inlined_call_operand.vmem [shape: f32[4,1], index: 2, kind: input, shape index: {}]
  %s3 = inlined_call_operand.vmem [shape: f32[4,1], index: 3, kind: output, shape index: {}]
  %s4 = sld [smem:[#allocation0]]
  $region38: #{tpu_custom_call.1} parent=0
    _
  %s6 = ssub.s32 1, %s4
  %s7 = scalar_select 0, %s6, %s4
  $region1: #{tpu_custom_call.1} parent=0
    #allocation3 [shape = 'u8[512]{0}', space=smem, size = 0x200, scoped, tag = 'input window, operand 0, single buffered']
    #allocation4 [shape = 's32[1]{0}', space=sflag, size = 0x4, scoped, tag = 'scoped memory for tpu_custom_call.1']
    #allocation5 [shape = 's32[1]{0}', space=sflag, size = 0x4, scoped, tag = 'scoped memory for tpu_custom_call.1']
    #allocation6 [shape = 'u8[8192]{0}', space=vmem, size = 0x2000, scoped, tag = 'input window, operand 1, single buffered']
    %8 = vsyncpa [#allocation5], 0
    %9 = vsyncpa [#allocation4], 0
    // Predicated region
    $region2: #{tpu_custom_call.1} parent=1 // pred_check
      _
    $region3: #{tpu_custom_call.1} parent=1 // pred_check_branch
      %11 = sbr.rel (0) target = $region5
    $region4: #{tpu_custom_call.1} parent=1 // pred_region
      %13 = vsyncadd [#allocation5], 0
      %s15 = sshll.u32 %s0, 4
      %s16 = int_to_ptr.vmem [resolvable:$true] %s15
      %18 = dma.vmem_to_smem %s16, 16, [#allocation3], [#allocation5]
    $region5: #{tpu_custom_call.1} parent=1 // pred_fallthru
      _
    // Predicated region
    $region6: #{tpu_custom_call.1} parent=1 // pred_check
      _
    $region7: #{tpu_custom_call.1} parent=1 // pred_check_branch
      %20 = sbr.rel (0) target = $region9
    $region8: #{tpu_custom_call.1} parent=1 // pred_region
      %22 = vsyncadd [#allocation4], 0
      %s23 = sshll.u32 %s1, 4
      %s24 = int_to_ptr.hbm [resolvable:$true] %s23
      %s25 = sshll.u32 [#allocation6], 4
      %s26 = int_to_ptr.vmem [resolvable:$true] %s25
      %31 = dma.hbm_to_vmem [thread:$0]  %s24, 256, %s26, [#allocation4], 128, 128, 8
    $region9: #{tpu_custom_call.1} parent=1 // pred_fallthru
      _
    // Predicated region
    $region10: #{tpu_custom_call.1} parent=1 // pred_check
      _
    $region11: #{tpu_custom_call.1} parent=1 // pred_check_branch
      %33 = sbr.rel (0) target = $region13
    $region12: #{tpu_custom_call.1} parent=1 // pred_region
      _
    $region13: #{tpu_custom_call.1} parent=1 // pred_fallthru
      _
    // Predicated region
    $region14: #{tpu_custom_call.1} parent=1 // pred_check
      _
    $region15: #{tpu_custom_call.1} parent=1 // pred_check_branch
      %35 = sbr.rel (0) target = $region17
    $region16: #{tpu_custom_call.1} parent=1 // pred_region
      %37 = dma.done [#allocation5], 16
    $region17: #{tpu_custom_call.1} parent=1 // pred_fallthru
      _
    // Predicated region
    $region18: #{tpu_custom_call.1} parent=1 // pred_check
      _
    $region19: #{tpu_custom_call.1} parent=1 // pred_check_branch
      %39 = sbr.rel (0) target = $region21
    $region20: #{tpu_custom_call.1} parent=1 // pred_region
      %41 = dma.done [#allocation4], 256
    $region21: #{tpu_custom_call.1} parent=1 // pred_fallthru
      _
    %42 = sfence
    %p43 = scmp.eq.s32.totalorder 0, 0
    %p44 = scmp.eq.s32.totalorder 0, 0
    %p45 = pnand %p43, %p44
    %p46 = pneg %p45
    // Predicated region
    $region22: #{tpu_custom_call.1} parent=1 // pred_check
      _
    $region23: #{tpu_custom_call.1} parent=1 // pred_check_branch
      %48 = sbr.rel (%p45) target = $region25
    $region24: #{tpu_custom_call.1} parent=1 // pred_region
      %49 = vst [vmem:[#allocation2] sm:$0xff] 0.0
    $region25: #{tpu_custom_call.1} parent=1 // pred_fallthru
      _
    %v50 = vld [vmem:[#allocation2] sm:$0xff]
    %v51 = vld [vmem:[#allocation6] sm:$0xff]
    %v52 = vld [vmem:[#allocation6 + $0x8] sm:$0xff]
    %55 = vst [vmem:[#allocation1] ss:$2 sm:$0xff] %v51
    %v56 = vld.sshfl [vmem:[#allocation1] sm:$0xff pattern:$0x75316420]
    %v57 = vld.sshfl [vmem:[#allocation1 + $0x8] sm:$0xff pattern:$0x75316420]
    %s58 = scalar_lea.vmem [#allocation1], 16
    %59 = vst [vmem:[%s58] ss:$2 sm:$0xff] %v52
    %v60 = vld.sshfl [vmem:[#allocation1 + $0x10] sm:$0xff pattern:$0x75316420]
    %v61 = vld.sshfl [vmem:[#allocation1 + $0x18] sm:$0xff pattern:$0x75316420]
    %vm66 = vcmask 1043456
    %v67 = vsel %vm66, %v56, 0.0
    %v68 = vsel %vm66, %v60, 0.0
    %v69 = vadd.f32 %v67, %v68
    %v70 = vsel %vm66, %v57, 0.0
    %v71 = vsel %vm66, %v61, 0.0
    %v72 = vadd.f32 %v70, %v71
    %v75 = vrot.slane %v72, 4
    %v76 = vsel %vm66, %v69, %v75
    %v78 = vadd.f32 %v50, %v76
    %79 = vst [vmem:[#allocation2] sm:$0xff] %v78
    // Predicated region
    $region26: #{tpu_custom_call.1} parent=1 // pred_check
      _
    $region27: #{tpu_custom_call.1} parent=1 // pred_check_branch
      %81 = sbr.rel (%p45) target = $region29
    $region28: #{tpu_custom_call.1} parent=1 // pred_region
      %s82 = sld [smem:[#allocation3]]
      %s83 = sld [smem:[#allocation3 + $0x1]]
      %v84 = vld [vmem:[#allocation2] sm:$0xff]
      %86 = vst [vmem:[#allocation1] ss:$2 sm:$0xff] %v84
      %v87 = vld.sshfl [vmem:[#allocation1] sm:$0xff pattern:$0x75316420]
      %v88 = vld.sshfl [vmem:[#allocation1 + $0x8] sm:$0xff pattern:$0x75316420]
      %v91 = vsel %vm66, %v87, 0.0
      %v92 = vsel %vm66, %v88, 0.0
      %v93 = vadd.f32 %v91, %v92
      %94 = vadd.xlane.f32.xlu0 %v93
      %v95 = vpop.xlane.xlu0 %94
      %v96 = vstv %s83
      %v97 = vmul.f32 %v95, %v96
      %s98 = ssub.f32 1.0, %s82
      %v99 = vld [vmem:[%s2] sm:$0xf]
      %v100 = vstv %s98
      %v101 = vmul.f32 %v100, %v99
      %v102 = vstv %s82
      %v103 = vmul.f32 %v102, %v97
      %v104 = vadd.f32 %v101, %v103
      %vm105 = vcmask 3072
      %106 = vst.msk [vmem:[%s3] sm:$0xf] %vm105, %v104
    $region29: #{tpu_custom_call.1} parent=1 // pred_fallthru
      _
    // Predicated region
    $region30: #{tpu_custom_call.1} parent=1 // pred_check
      _
    $region31: #{tpu_custom_call.1} parent=1 // pred_check_branch
      %108 = sbr.rel (0) target = $region33
    $region32: #{tpu_custom_call.1} parent=1 // pred_region
      _
    $region33: #{tpu_custom_call.1} parent=1 // pred_fallthru
      _
    // Predicated region
    $region34: #{tpu_custom_call.1} parent=1 // pred_check
      _
    $region35: #{tpu_custom_call.1} parent=1 // pred_check_branch
      %110 = sbr.rel (0) target = $region37
    $region36: #{tpu_custom_call.1} parent=1 // pred_region
      _
    $region37: #{tpu_custom_call.1} parent=1 // pred_fallthru
      _
    %111 = vsyncpa [#allocation4], 1
    %112 = vsyncpa [#allocation5], 1

</llo_original>
